<compile_context>
chip_gen: v7x
topology: tpu7x:2x2x1
jax: 0.10.0
libtpu: 0.0.40
codegen_flags: <defaults>
</compile_context>

<pallas_src>
import functools
import math

import jax
import jax.numpy as jnp
from jax import lax
from jax.experimental import pallas as pl
from jax.experimental.pallas import tpu as pltpu


# --------------------------------------------------------------------------- #
# In-kernel counter-based PRNG (pure VPU integer ops; portable everywhere).
# --------------------------------------------------------------------------- #
def _mix_u32(x):
    """32-bit integer finalizer (lowbias32-style); plain VPU int ops."""
    x = x ^ (x >> 16)
    x = x * jnp.uint32(0x7FEB352D)
    x = x ^ (x >> 15)
    x = x * jnp.uint32(0x846CA68B)
    x = x ^ (x >> 16)
    return x


# --------------------------------------------------------------------------- #
# Kernels
# --------------------------------------------------------------------------- #
def _pe_dropout_kernel(seed_ref, x_ref, pe_ref, o_ref, *,
                       keep_threshold, scale, block_rows):
    """Training: out = inverted-dropout(x + pe, p).  Blocks are (rows, D)."""
    tr, d = x_ref.shape
    y = x_ref[...].astype(jnp.float32) + pe_ref[...]

    # Global (tiling-independent) element index -> per-element random bits.
    row0 = pl.program_id(0).astype(jnp.uint32) * jnp.uint32(block_rows)
    row = lax.broadcasted_iota(jnp.int32, (tr, d), 0).astype(jnp.uint32) + row0
    col = lax.broadcasted_iota(jnp.int32, (tr, d), 1).astype(jnp.uint32)
    idx = row * jnp.uint32(d) + col
    seed = seed_ref[0].astype(jnp.uint32)
    bits = _mix_u32(idx + seed * jnp.uint32(0x9E3779B9))

    # keep with probability (1 - p): compare raw bits vs integer threshold
    # (no float convert / masking ops needed).
    keep = bits >= jnp.uint32(keep_threshold)
    o_ref[...] = jnp.where(keep, y * scale, 0.0).astype(o_ref.dtype)


def _pe_add_kernel(x_ref, pe_ref, o_ref):
    """Eval: out = x + pe (dropout is identity)."""
    o_ref[...] = (x_ref[...].astype(jnp.float32) + pe_ref[...]).astype(o_ref.dtype)


# --------------------------------------------------------------------------- #
# Parameter setup (done once, plain JAX — mirrors the module's __init__)
# --------------------------------------------------------------------------- #
def make_pe_buffer(d_model, max_len=5000):
    """Sin/cos positional-encoding table, shape (max_len, 1, d_model), f32."""
    position = jnp.arange(max_len, dtype=jnp.float32)[:, None]
    div_term = jnp.exp(
        jnp.arange(0, d_model, 2, dtype=jnp.float32) * (-math.log(10000.0) / d_model)
    )
    pe = jnp.zeros((max_len, 1, d_model), jnp.float32)
    pe = pe.at[:, 0, 0::2].set(jnp.sin(position * div_term))
    pe = pe.at[:, 0, 1::2].set(jnp.cos(position * div_term))
    return pe


# --------------------------------------------------------------------------- #
# Tiling
# --------------------------------------------------------------------------- #
# ~2 MiB per buffer; 3 buffers (x, pe, out) x double-buffering ~= 12 MiB,
# which fits v5e's 16 MiB default scoped VMEM and v7x's 64 MiB physical VMEM.
_TARGET_TILE_BYTES = 2 << 20


def _pick_block_rows(n_rows, row_bytes):
    if n_rows <= 8:
        return int(n_rows)                       # block == full dim is always legal
    rows = max(8, (_TARGET_TILE_BYTES // max(1, row_bytes)) // 8 * 8)
    rows = min(rows, (n_rows // 8) * 8)          # sublane-aligned (multiple of 8)
    return int(rows)


# --------------------------------------------------------------------------- #
# Wrapper
# --------------------------------------------------------------------------- #
def positional_encoding_forward(x, pe, *, p=0.1, training=True, seed=0,
                                block_rows=None):
    """x: (S, B, D); pe: (max_len, 1, D) f32.  Returns (S, B, D) in x.dtype."""
    S, B, D = x.shape
    if training and p >= 1.0:
        return jnp.zeros_like(x)                 # matches torch.nn.Dropout(p=1.0)

    # Fold batch into rows -> lane/sublane-dense 2-D blocks (rows, D).
    R = S * B
    x2 = x.reshape(R, D)
    pe2 = jnp.broadcast_to(pe[:S].astype(jnp.float32), (S, B, D)).reshape(R, D)

    itemsize = jnp.dtype(x.dtype).itemsize
    tr = _pick_block_rows(R, D * itemsize) if block_rows is None else int(block_rows)
    grid = (pl.cdiv(R, tr),)

    cparams = pltpu.CompilerParams(
        dimension_semantics=("parallel",),       # independent tiles -> both v7x TCs
        vmem_limit_bytes=32 * 1024 * 1024,
    )

    apply_dropout = training and p > 0.0
    if not apply_dropout:
        # Eval path: no seed / scalar prefetch at all.
        out2 = pl.pallas_call(
            _pe_add_kernel,
            out_shape=jax.ShapeDtypeStruct((R, D), x.dtype),
            grid=grid,
            in_specs=[pl.BlockSpec((tr, D), lambda i: (i, 0)),
                      pl.BlockSpec((tr, D), lambda i: (i, 0))],
            out_specs=pl.BlockSpec((tr, D), lambda i: (i, 0)),
            compiler_params=cparams,
        )(x2, pe2)
    else:
        keep_threshold = min(int(round(p * 2.0 ** 32)), 2 ** 32 - 1)
        scale = 1.0 / (1.0 - p)
        kernel = functools.partial(
            _pe_dropout_kernel,
            keep_threshold=keep_threshold, scale=scale, block_rows=tr,
        )
        out2 = pl.pallas_call(
            kernel,
            out_shape=jax.ShapeDtypeStruct((R, D), x.dtype),
            grid_spec=pltpu.PrefetchScalarGridSpec(
                num_scalar_prefetch=1,           # seed lands in SMEM
                grid=grid,
                in_specs=[pl.BlockSpec((tr, D), lambda i, seed_ref: (i, 0)),
                          pl.BlockSpec((tr, D), lambda i, seed_ref: (i, 0))],
                out_specs=pl.BlockSpec((tr, D), lambda i, seed_ref: (i, 0)),
            ),
            compiler_params=cparams,
        )(jnp.asarray([seed], jnp.int32), x2, pe2)

    return out2.reshape(S, B, D)


# --------------------------------------------------------------------------- #
# Main
# --------------------------------------------------------------------------- #
if __name__ == "__main__":
    seq_len, batch, d_model = 8, 2, 32
    max_len = 64
    dropout_p = 0.1

    key = jax.random.PRNGKey(0)
    x = jax.random.normal(key, (seq_len, batch, d_model), dtype=jnp.float32)
    pe = make_pe_buffer(d_model, max_len)
    ref = x + pe[:seq_len]

    # Eval mode: dropout is identity -> exact match against pure JAX.
    out_eval = positional_encoding_forward(x, pe, p=dropout_p, training=False)
    jax.block_until_ready(out_eval)
    assert out_eval.shape == (seq_len, batch, d_model)
    assert jnp.allclose(out_eval, ref, atol=1e-6, rtol=1e-6), "eval-mode mismatch"

    # Training mode: inverted dropout of (x + pe).
    out_train = positional_encoding_forward(x, pe, p=dropout_p, training=True,
                                            seed=123)
    jax.block_until_ready(out_train)
    assert out_train.shape == (seq_len, batch, d_model)
    kept = out_train != 0
    assert bool(jnp.any(kept))
    # Every kept element must equal (x + pe) / (1 - p).
    recon = jnp.where(kept, out_train * (1.0 - dropout_p), 0.0)
    assert jnp.allclose(recon, jnp.where(kept, ref, 0.0), atol=1e-5, rtol=1e-5)

    # Dropout mask is derived from global element indices -> independent of tiling.
    out_train_b8 = positional_encoding_forward(x, pe, p=dropout_p, training=True,
                                               seed=123, block_rows=8)
    jax.block_until_ready(out_train_b8)
    assert bool(jnp.array_equal(out_train, out_train_b8)), "mask depends on tiling"

    print("KERNEL_OK")
</pallas_src>

<mosaic_0001>
module attributes {stable_mosaic.version = 11 : i64} {
  func.func @_pe_add_kernel(%arg0: i32, %arg1: memref<16x32xf32, #tpu.memory_space<vmem>>, %arg2: memref<16x32xf32, #tpu.memory_space<vmem>>, %arg3: memref<16x32xf32, #tpu.memory_space<vmem>>) attributes {dimension_semantics = [#tpu.dimension_semantics<parallel>], iteration_bounds = array<i64: 1>, scalar_prefetch = 0 : i64, scratch_operands = 0 : i64, tpu.core_type = #tpu.core_type<tc>, window_params = [{transform_indices = @transform_0, window_bounds = array<i64: 16, 32>}, {transform_indices = @transform_1, window_bounds = array<i64: 16, 32>}, {transform_indices = @transform_2, window_bounds = array<i64: 16, 32>}]} {
    %c0 = arith.constant 0 : index
    %c0_0 = arith.constant 0 : index
    %0 = vector.load %arg1[%c0, %c0_0] : memref<16x32xf32, #tpu.memory_space<vmem>>, vector<16x32xf32>
    %c0_1 = arith.constant 0 : index
    %c0_2 = arith.constant 0 : index
    %1 = vector.load %arg2[%c0_1, %c0_2] : memref<16x32xf32, #tpu.memory_space<vmem>>, vector<16x32xf32>
    %2 = arith.addf %0, %1 : vector<16x32xf32>
    %c0_3 = arith.constant 0 : index
    %c0_4 = arith.constant 0 : index
    %3 = vector.load %arg3[%c0_3, %c0_4] : memref<16x32xf32, #tpu.memory_space<vmem>>, vector<16x32xf32>
    tpu.vector_store %arg3[%c0_3, %c0_4], %2 {strides = array<i32>} : memref<16x32xf32, #tpu.memory_space<vmem>>, vector<16x32xf32>,
    return
  }
  func.func @transform_0(%arg0: i32) -> (i32, i32) {
    %c0_i32 = arith.constant 0 : i32
    %c0_i32_0 = arith.constant 0 : i32
    return %arg0, %c0_i32 : i32, i32
  }
  func.func @transform_1(%arg0: i32) -> (i32, i32) {
    %c0_i32 = arith.constant 0 : i32
    %c0_i32_0 = arith.constant 0 : i32
    return %arg0, %c0_i32 : i32, i32
  }
  func.func @transform_2(%arg0: i32) -> (i32, i32) {
    %c0_i32 = arith.constant 0 : i32
    %c0_i32_0 = arith.constant 0 : i32
    return %arg0, %c0_i32 : i32, i32
  }
}

</mosaic_0001>

<llo_original>
// kernel: tpu_custom_call.1
$region0: #{tpu_custom_call.1}
  #allocation0 [shape = 'u32[]', space=smem, size = 0x4, offset = 0x4, fixed_abs, tag = 'smem constant byte address 0x4 - core index']
  #allocation1 [shape = 'u32[144,128]{1,0:T(1,128)}', space=vmem, size = 0x12000, scoped, tag = 'internal scratch']
  %s0 = inlined_call_operand.hbm [shape: f32[16,32], index: 0, kind: input, shape index: {}]
  %s1 = inlined_call_operand.hbm [shape: f32[16,32], index: 1, kind: input, shape index: {}]
  %s2 = inlined_call_operand.hbm [shape: f32[16,32], index: 2, kind: output, shape index: {}]
  %s3 = sld [smem:[#allocation0]]
  $region26: #{tpu_custom_call.1} parent=0
    _
  %s5 = ssub.s32 1, %s3
  %s6 = scalar_select 0, %s5, %s3
  $region1: #{tpu_custom_call.1} parent=0
    #allocation2 [shape = 'u8[8192]{0}', space=vmem, size = 0x2000, scoped, tag = 'input window, operand 0, single buffered']
    #allocation3 [shape = 's32[1]{0}', space=sflag, size = 0x4, scoped, tag = 'scoped memory for tpu_custom_call.1']
    #allocation4 [shape = 's32[1]{0}', space=sflag, size = 0x4, scoped, tag = 'scoped memory for tpu_custom_call.1']
    #allocation5 [shape = 'u8[8192]{0}', space=vmem, size = 0x2000, scoped, tag = 'input window, operand 1, single buffered']
    #allocation6 [shape = 's32[1]{0}', space=sflag, size = 0x4, scoped, tag = 'scoped memory for tpu_custom_call.1']
    #allocation7 [shape = 'u8[8192]{0}', space=vmem, size = 0x2000, scoped, tag = 'output window, operand 0, single buffered']
    %7 = vsyncpa [#allocation3], 0
    %8 = vsyncpa [#allocation6], 0
    %9 = vsyncpa [#allocation4], 0
    // Predicated region
    $region2: #{tpu_custom_call.1} parent=1 // pred_check
      _
    $region3: #{tpu_custom_call.1} parent=1 // pred_check_branch
      %11 = sbr.rel (0) target = $region5
    $region4: #{tpu_custom_call.1} parent=1 // pred_region
      %s13 = ssub.s32 256, 256
      %14 = vsyncadd [#allocation3], %s13
      %s15 = sshll.u32 [#allocation2], 4
      %s16 = int_to_ptr.vmem [resolvable:$true] %s15
      %21 = dma.hbm_to_vmem [thread:$0]  %s0, 256, %s16, [#allocation3], 128, 128, 8
    $region5: #{tpu_custom_call.1} parent=1 // pred_fallthru
      _
    // Predicated region
    $region6: #{tpu_custom_call.1} parent=1 // pred_check
      _
    $region7: #{tpu_custom_call.1} parent=1 // pred_check_branch
      %23 = sbr.rel (0) target = $region9
    $region8: #{tpu_custom_call.1} parent=1 // pred_region
      %s25 = ssub.s32 256, 256
      %26 = vsyncadd [#allocation6], %s25
      %s27 = sshll.u32 [#allocation5], 4
      %s28 = int_to_ptr.vmem [resolvable:$true] %s27
      %33 = dma.hbm_to_vmem [thread:$0]  %s1, 256, %s28, [#allocation6], 128, 128, 8
    $region9: #{tpu_custom_call.1} parent=1 // pred_fallthru
      _
    // Predicated region
    $region10: #{tpu_custom_call.1} parent=1 // pred_check
      _
    $region11: #{tpu_custom_call.1} parent=1 // pred_check_branch
      %35 = sbr.rel (0) target = $region13
    $region12: #{tpu_custom_call.1} parent=1 // pred_region
      %36 = dma.done [#allocation3], 256
    $region13: #{tpu_custom_call.1} parent=1 // pred_fallthru
      _
    // Predicated region
    $region14: #{tpu_custom_call.1} parent=1 // pred_check
      _
    $region15: #{tpu_custom_call.1} parent=1 // pred_check_branch
      %38 = sbr.rel (0) target = $region17
    $region16: #{tpu_custom_call.1} parent=1 // pred_region
      %39 = dma.done [#allocation6], 256
    $region17: #{tpu_custom_call.1} parent=1 // pred_fallthru
      _
    %v40 = vld [vmem:[#allocation2] sm:$0xff]
    %v41 = vld [vmem:[#allocation2 + $0x8] sm:$0xff]
    %v42 = vld [vmem:[#allocation5] sm:$0xff]
    %v43 = vld [vmem:[#allocation5 + $0x8] sm:$0xff]
    %v44 = vadd.f32 %v40, %v42
    %v45 = vadd.f32 %v41, %v43
    %vm46 = vcmask 261120
    %47 = vst.msk [vmem:[#allocation7] sm:$0xff] %vm46, %v44
    %48 = vst.msk [vmem:[#allocation7 + $0x8] sm:$0xff] %vm46, %v45
    // Predicated region
    $region18: #{tpu_custom_call.1} parent=1 // pred_check
      _
    $region19: #{tpu_custom_call.1} parent=1 // pred_check_branch
      %50 = sbr.rel (0) target = $region21
    $region20: #{tpu_custom_call.1} parent=1 // pred_region
      %s52 = ssub.s32 256, 256
      %53 = vsyncadd [#allocation4], %s52
      %s54 = sshll.u32 [#allocation7], 4
      %s55 = int_to_ptr.vmem [resolvable:$true] %s54
      %60 = dma.vmem_to_hbm [thread:$0]  %s55, 256, %s2, [#allocation4], 128, 128, 8
    $region21: #{tpu_custom_call.1} parent=1 // pred_fallthru
      _
    // Predicated region
    $region22: #{tpu_custom_call.1} parent=1 // pred_check
      _
    $region23: #{tpu_custom_call.1} parent=1 // pred_check_branch
      %62 = sbr.rel (0) target = $region25
    $region24: #{tpu_custom_call.1} parent=1 // pred_region
      %63 = dma.done [#allocation4], 256
    $region25: #{tpu_custom_call.1} parent=1 // pred_fallthru
      _
    %64 = vsyncpa [#allocation3], 1
    %65 = vsyncpa [#allocation6], 1
    %66 = vsyncpa [#allocation4], 1

</llo_original>
